<compile_context>
chip_gen: v7x
topology: tpu7x:2x2x1
jax: 0.10.0
libtpu: 0.0.40
codegen_flags: <defaults>
</compile_context>

<pallas_src>
import functools

import jax
import jax.numpy as jnp
from jax import lax
from jax.experimental import pallas as pl
from jax.experimental.pallas import tpu as pltpu


# --------------------------------------------------------------------------- helpers

def _round_up(x, m):
    return ((x + m - 1) // m) * m


def _vmem_budget_bytes():
    """75% of this generation's VMEM (headroom for compiler temps), capped at 100 MiB."""
    cap = 64 * 2**20
    try:
        info = pltpu.get_tpu_info()
        cap = int(getattr(info, "vmem_capacity_bytes", cap) or cap)
    except Exception:
        pass
    return min(int(cap * 0.75), 100 * 2**20)


def _choose_tile(dim, max_tile=512):
    """Pick a lane-aligned tile (multiple of 128, preferring multiples of 256 for full
    MXU passes on v6e/v7x) and the padded dim (a multiple of the tile)."""
    dim128 = _round_up(dim, 128)
    if dim128 <= max_tile:
        return dim128, dim128
    divisors = [t for t in range(128, max_tile + 1, 128) if dim128 % t == 0]
    div256 = [t for t in divisors if t % 256 == 0]
    if div256:
        return max(div256), dim128
    best = max(divisors)               # dim128 is a multiple of 128, so best >= 128
    if best >= 256:
        return best, dim128
    # Only 128 divides exactly (e.g. 640, 896): pad up to a 256-wide tile if the extra
    # traffic stays small rather than collapsing to 128-wide tiles.
    padded = _round_up(dim128, 256)
    if padded - dim128 <= dim128 // 4:
        return 256, padded
    return best, dim128


def _choose_n_tile(n, max_tile=512):
    tn, n_pad = _choose_tile(n, max_tile)
    # Give the "parallel" N axis >= 2 blocks when it can be done with full-MXU (>=256)
    # tiles, so v7x's two TensorCores both get work.
    if n_pad == tn and tn >= 512 and (tn // 2) % 256 == 0:
        tn //= 2
    return tn, n_pad


def _choose_batch_tile(b, max_tile=256):
    """Sublane-aligned batch tile for the (no-BN) path; pads B with zero rows."""
    b8 = _round_up(b, 8)
    if b8 <= max_tile:
        return b8, b8
    divisors = [t for t in range(8, max_tile + 1, 8) if b8 % t == 0]
    best = max(divisors)
    if best >= 128:
        return best, b8
    return 128, _round_up(b8, 128)


# --------------------------------------------------------------------------- kernels

def _linear_relu_kernel(x_ref, w_ref, o_ref, *, tk, x_resident):
    # grid = (batch tile i, N tile j, K step k); o block index is (i, j) => VMEM-resident
    # across k, so o_ref doubles as the f32 accumulator.
    k = pl.program_id(2)

    @pl.when(k == 0)
    def _():
        o_ref[...] = jnp.zeros_like(o_ref)

    if x_resident:
        off = pl.multiple_of(k * tk, 128)
        x_blk = x_ref[:, pl.ds(off, tk)]
    else:
        x_blk = x_ref[...]

    o_ref[...] += jnp.dot(
        x_blk.astype(w_ref.dtype), w_ref[...],
        preferred_element_type=jnp.float32,
    )

    @pl.when(k == pl.num_programs(2) - 1)
    def _():
        o_ref[...] = jnp.maximum(o_ref[...], 0.0)


def _linear_bn_relu_kernel(x_ref, w_ref, gamma_ref, beta_ref, o_ref, *,
                           tk, x_resident, eps, inv_b):
    # grid = (N tile j, K step k); batch stays un-tiled so per-column batch statistics
    # over axis 0 are exact. o_ref is the f32 accumulator (resident across k).
    k = pl.program_id(1)

    @pl.when(k == 0)
    def _():
        o_ref[...] = jnp.zeros_like(o_ref)

    if x_resident:
        off = pl.multiple_of(k * tk, 128)
        x_blk = x_ref[:, pl.ds(off, tk)]
    else:
        x_blk = x_ref[...]

    o_ref[...] += jnp.dot(
        x_blk.astype(w_ref.dtype), w_ref[...],
        preferred_element_type=jnp.float32,
    )

    @pl.when(k == pl.num_programs(1) - 1)
    def _():
        y = o_ref[...]                                            # (B, tn) f32
        # Centered two-pass variance (training-mode / biased, matches BatchNorm1d.train()).
        mean = jnp.sum(y, axis=0, keepdims=True) * inv_b
        var = jnp.sum((y - mean) * (y - mean), axis=0, keepdims=True) * inv_b
        # Fold gamma/beta into one FMA: y*scale + shift.  rsqrt goes to the EUP slot.
        scale = gamma_ref[...] * lax.rsqrt(var + eps)
        shift = beta_ref[...] - mean * scale
        o_ref[...] = jnp.maximum(y * scale + shift, 0.0)


# --------------------------------------------------------------------------- wrappers

def prepare_linear_block_params(w, gamma=None, beta=None, *,
                                matmul_dtype=jnp.bfloat16, max_tile=512):
    """One-time parameter prep: bf16 cast + lane padding of the weight (and gamma/beta).

    w:     (size_in, size_out) float32  (transpose of torch nn.Linear.weight)
    gamma: (1, size_out) or (size_out,) -- BatchNorm1d weight (optional)
    beta:  (1, size_out) or (size_out,) -- BatchNorm1d bias   (optional)
    """
    K, N = w.shape
    tk, K_pad = _choose_tile(K, max_tile)
    tn, N_pad = _choose_n_tile(N, max_tile)

    w_c = w.astype(matmul_dtype)
    if (K_pad, N_pad) != (K, N):
        w_c = jnp.pad(w_c, ((0, K_pad - K), (0, N_pad - N)))

    params = {"w": w_c, "K": K, "N": N, "tk": tk, "tn": tn,
              "K_pad": K_pad, "N_pad": N_pad}

    if gamma is not None:
        g = jnp.asarray(gamma, jnp.float32).reshape(1, -1)
        b = jnp.asarray(beta, jnp.float32).reshape(1, -1)
        if N_pad != N:
            g = jnp.pad(g, ((0, 0), (0, N_pad - N)))
            b = jnp.pad(b, ((0, 0), (0, N_pad - N)))
        params["gamma"] = g
        params["beta"] = b
    return params


def linear_block_forward(x, params, *, batch_norm=False, eps=1e-5):
    """Forward pass of LinearBlock using pre-prepared (cached) params.

    x: (B, size_in) float32 -> (B, size_out) float32
    """
    B, K = x.shape
    assert K == params["K"], "input feature dim mismatch"
    tk, tn = params["tk"], params["tn"]
    K_pad, N_pad, N = params["K_pad"], params["N_pad"], params["N"]
    w_c = params["w"]
    wbytes = jnp.dtype(w_c.dtype).itemsize

    budget = _vmem_budget_bytes()

    if batch_norm:
        assert "gamma" in params and "beta" in params, "BN params missing"
        # Exact batch statistics need the whole batch in one output block.
        # (If B % 8 != 0 this is still correct, just uses masked sublane stores.)
        tb, B_pad = B, B
    else:
        tb, B_pad = _choose_batch_tile(B)   # padded rows are zeros -> relu(0)=0, sliced off

    x_p = x.astype(jnp.float32)             # x stays f32 in HBM; cast to bf16 in-kernel
    if B_pad != B or K_pad != K:
        x_p = jnp.pad(x_p, ((0, B_pad - B), (0, K_pad - K)))

    n_i = 1 if batch_norm else B_pad // tb
    n_j = N_pad // tn
    n_k = K_pad // tk

    # Keep x VMEM-resident across N tiles when the (double-buffered) block fits the budget.
    x_resident = (2 * tb * K_pad * 4) <= budget // 3
    x_k_dim = K_pad if x_resident else tk

    # 3-deep weight pipeline for small-batch (memory-bound) shapes with enough steps.
    w_buffers = 3 if (tb <= 128 and n_j * n_k >= 3) else 2
    w_kwargs = {"pipeline_mode": pl.Buffered(3)} if w_buffers == 3 else {}

    # VMEM footprint (double-buffered streams; output block is also the accumulator).
    footprint = (2 * tb * x_k_dim * 4
                 + w_buffers * tk * tn * wbytes
                 + 2 * tb * tn * 4)
    if batch_norm:
        footprint += 2 * 2 * tn * 4
        if footprint > budget:
            # TODO(synk): two-phase BatchNorm reduction (per-B-tile partial sum/sumsq)
            # for batches too large to keep resident in VMEM.
            raise ValueError(
                f"LinearBlock BN path: batch={B} needs ~{footprint >> 20} MiB VMEM, "
                f"budget is {budget >> 20} MiB")
    vmem_limit = int(min(max(2 * footprint, 16 * 2**20), budget))

    cost = pl.CostEstimate(
        flops=2 * B_pad * K_pad * N_pad,
        transcendentals=0,
        bytes_accessed=int(B_pad * K_pad * 4 + K_pad * N_pad * wbytes + B_pad * N_pad * 4),
    )
    out_shape = jax.ShapeDtypeStruct((B_pad, N_pad), jnp.float32)

    if batch_norm:
        grid = (n_j, n_k)
        if x_resident:
            x_spec = pl.BlockSpec((B_pad, K_pad), lambda j, k: (0, 0))
        else:
            x_spec = pl.BlockSpec((B_pad, tk), lambda j, k: (0, k))
        w_spec = pl.BlockSpec((tk, tn), lambda j, k: (k, j), **w_kwargs)
        o_spec = pl.BlockSpec((B_pad, tn), lambda j, k: (0, j))
        gb_spec = pl.BlockSpec((1, tn), lambda j, k: (0, j))
        kernel = functools.partial(_linear_bn_relu_kernel, tk=tk,
                                   x_resident=x_resident, eps=float(eps),
                                   inv_b=1.0 / float(B))
        in_specs = [x_spec, w_spec, gb_spec, gb_spec]
        args = (x_p, w_c, params["gamma"], params["beta"])
        dims = ("parallel", "arbitrary")
    else:
        grid = (n_i, n_j, n_k)
        if x_resident:
            x_spec = pl.BlockSpec((tb, K_pad), lambda i, j, k: (i, 0))
        else:
            x_spec = pl.BlockSpec((tb, tk), lambda i, j, k: (i, k))
        w_spec = pl.BlockSpec((tk, tn), lambda i, j, k: (k, j), **w_kwargs)
        o_spec = pl.BlockSpec((tb, tn), lambda i, j, k: (i, j))
        kernel = functools.partial(_linear_relu_kernel, tk=tk, x_resident=x_resident)
        in_specs = [x_spec, w_spec]
        args = (x_p, w_c)
        dims = ("parallel", "parallel", "arbitrary")

    out = pl.pallas_call(
        kernel,
        out_shape=out_shape,
        grid=grid,
        in_specs=in_specs,
        out_specs=o_spec,
        compiler_params=pltpu.CompilerParams(
            dimension_semantics=dims,
            vmem_limit_bytes=vmem_limit,
        ),
        cost_estimate=cost,
    )(*args)

    if B_pad != B or N_pad != N:
        out = out[:B, :N]
    return out


# --------------------------------------------------------------------------- reference

def _reference(x, w, gamma=None, beta=None, *, batch_norm=False, eps=1e-5,
               matmul_dtype=jnp.bfloat16):
    xb = x.astype(matmul_dtype).astype(jnp.float32)
    wb = w.astype(matmul_dtype).astype(jnp.float32)
    y = xb @ wb
    if batch_norm:
        mean = jnp.mean(y, axis=0, keepdims=True)
        var = jnp.mean((y - mean) ** 2, axis=0, keepdims=True)
        y = (y - mean) * lax.rsqrt(var + eps) * gamma + beta
    return jnp.maximum(y, 0.0)


if __name__ == "__main__":
    key = jax.random.PRNGKey(0)
    B, size_in, size_out = 8, 32, 64

    k_x, k_w = jax.random.split(key)
    x = jax.random.normal(k_x, (B, size_in), dtype=jnp.float32)

    # Deterministic init mimicking nn.Linear (Kaiming-uniform bound = 1/sqrt(fan_in)),
    # stored transposed as (size_in, size_out).
    bound = 1.0 / jnp.sqrt(jnp.float32(size_in))
    w = jax.random.uniform(
        k_w, (size_in, size_out), dtype=jnp.float32, minval=-bound, maxval=bound)
    # BatchNorm1d default init: weight=1, bias=0.
    gamma = jnp.ones((1, size_out), dtype=jnp.float32)
    beta = jnp.zeros((1, size_out), dtype=jnp.float32)

    # One-time weight prep (bf16 cast + padding), reused across forward calls.
    params_plain = prepare_linear_block_params(w)
    params_bn = prepare_linear_block_params(w, gamma, beta)

    # Variant 1: Linear -> ReLU
    out_plain = linear_block_forward(x, params_plain, batch_norm=False)
    jax.block_until_ready(out_plain)
    ref_plain = _reference(x, w, batch_norm=False)

    # Variant 2: Linear -> BatchNorm1d (training-mode batch stats) -> ReLU
    out_bn = linear_block_forward(x, params_bn, batch_norm=True)
    jax.block_until_ready(out_bn)
    ref_bn = _reference(x, w, gamma, beta, batch_norm=True)

    assert out_plain.shape == (B, size_out)
    assert out_bn.shape == (B, size_out)
    assert jnp.allclose(out_plain, ref_plain, atol=1e-4, rtol=1e-4)
    assert jnp.allclose(out_bn, ref_bn, atol=1e-3, rtol=1e-3)

    print("KERNEL_OK")
</pallas_src>

<mosaic_0001>
module attributes {stable_mosaic.version = 11 : i64} {
  func.func @_linear_relu_kernel(%arg0: i32, %arg1: i32, %arg2: i32, %arg3: memref<8x128xf32, #tpu.memory_space<vmem>>, %arg4: memref<128x128xbf16, #tpu.memory_space<vmem>>, %arg5: memref<8x128xf32, #tpu.memory_space<vmem>>) attributes {dimension_semantics = [#tpu.dimension_semantics<parallel>, #tpu.dimension_semantics<parallel>, #tpu.dimension_semantics<arbitrary>], iteration_bounds = array<i64: 1, 1, 1>, scalar_prefetch = 0 : i64, scratch_operands = 0 : i64, tpu.core_type = #tpu.core_type<tc>, window_params = [{transform_indices = @transform_0, window_bounds = array<i64: 8, 128>}, {transform_indices = @transform_1, window_bounds = array<i64: 128, 128>}, {transform_indices = @transform_2, window_bounds = array<i64: 8, 128>}]} {
    %c0_i32 = arith.constant 0 : i32
    %0 = arith.cmpi eq, %arg2, %c0_i32 : i32
    %1 = arith.extui %0 : i1 to i32
    %c0_i32_0 = arith.constant 0 : i32
    %2 = arith.cmpi ne, %1, %c0_i32_0 : i32
    scf.if %2 {
      %cst_9 = arith.constant 0.000000e+00 : f32
      %16 = vector.broadcast %cst_9 : f32 to vector<8x128xf32>
      %c0_10 = arith.constant 0 : index
      %c0_11 = arith.constant 0 : index
      %17 = vector.load %arg5[%c0_10, %c0_11] : memref<8x128xf32, #tpu.memory_space<vmem>>, vector<8x128xf32>
      tpu.vector_store %arg5[%c0_10, %c0_11], %16 {strides = array<i32>} : memref<8x128xf32, #tpu.memory_space<vmem>>, vector<8x128xf32>,
    } else {
    }
    %c128_i32 = arith.constant 128 : i32
    %3 = arith.muli %arg2, %c128_i32 : i32
    %4 = tpu.assume_multiple %3, 128 : i32
    %c0 = arith.constant 0 : index
    %5 = arith.index_cast %4 : i32 to index
    %6 = vector.load %arg3[%c0, %5] : memref<8x128xf32, #tpu.memory_space<vmem>>, vector<8x128xf32>
    %c0_1 = arith.constant 0 : index
    %c0_2 = arith.constant 0 : index
    %7 = vector.load %arg5[%c0_1, %c0_2] : memref<8x128xf32, #tpu.memory_space<vmem>>, vector<8x128xf32>
    %8 = arith.truncf %6 : vector<8x128xf32> to vector<8x128xbf16>
    %c0_3 = arith.constant 0 : index
    %c0_4 = arith.constant 0 : index
    %9 = vector.load %arg4[%c0_3, %c0_4] : memref<128x128xbf16, #tpu.memory_space<vmem>>, vector<128x128xbf16>
    %cst = arith.constant dense<0.000000e+00> : vector<8x128xf32>
    %10 = tpu.matmul %8, %9, %cst {dimension_numbers = #tpu.dot_dimension_numbers<[1], [0], [0], [1], [0, 0, 1, 1], [], []>} : vector<8x128xbf16>, vector<128x128xbf16>, vector<8x128xf32> -> vector<8x128xf32>
    %11 = arith.addf %7, %10 : vector<8x128xf32>
    %c0_5 = arith.constant 0 : index
    %c0_6 = arith.constant 0 : index
    %12 = vector.load %arg5[%c0_5, %c0_6] : memref<8x128xf32, #tpu.memory_space<vmem>>, vector<8x128xf32>
    tpu.vector_store %arg5[%c0_5, %c0_6], %11 {strides = array<i32>} : memref<8x128xf32, #tpu.memory_space<vmem>>, vector<8x128xf32>,
    %c0_i32_7 = arith.constant 0 : i32
    %13 = arith.cmpi eq, %arg2, %c0_i32_7 : i32
    %14 = arith.extui %13 : i1 to i32
    %c0_i32_8 = arith.constant 0 : i32
    %15 = arith.cmpi ne, %14, %c0_i32_8 : i32
    scf.if %15 {
      %c0_9 = arith.constant 0 : index
      %c0_10 = arith.constant 0 : index
      %16 = vector.load %arg5[%c0_9, %c0_10] : memref<8x128xf32, #tpu.memory_space<vmem>>, vector<8x128xf32>
      %cst_11 = arith.constant 0.000000e+00 : f32
      %17 = vector.broadcast %cst_11 : f32 to vector<8x128xf32>
      %18 = arith.maximumf %16, %17 : vector<8x128xf32>
      %c0_12 = arith.constant 0 : index
      %c0_13 = arith.constant 0 : index
      %19 = vector.load %arg5[%c0_12, %c0_13] : memref<8x128xf32, #tpu.memory_space<vmem>>, vector<8x128xf32>
      tpu.vector_store %arg5[%c0_12, %c0_13], %18 {strides = array<i32>} : memref<8x128xf32, #tpu.memory_space<vmem>>, vector<8x128xf32>,
    } else {
    }
    return
  }
  func.func @transform_0(%arg0: i32, %arg1: i32, %arg2: i32) -> (i32, i32) {
    %c0_i32 = arith.constant 0 : i32
    %c0_i32_0 = arith.constant 0 : i32
    return %arg0, %c0_i32 : i32, i32
  }
  func.func @transform_1(%arg0: i32, %arg1: i32, %arg2: i32) -> (i32, i32) {
    %c0_i32 = arith.constant 0 : i32
    return %arg2, %arg1 : i32, i32
  }
  func.func @transform_2(%arg0: i32, %arg1: i32, %arg2: i32) -> (i32, i32) {
    %c0_i32 = arith.constant 0 : i32
    return %arg0, %arg1 : i32, i32
  }
}

</mosaic_0001>

<llo_original>
// kernel: tpu_custom_call.1
$region0: #{tpu_custom_call.1}
  #allocation0 [shape = 'u32[]', space=smem, size = 0x4, offset = 0x4, fixed_abs, tag = 'smem constant byte address 0x4 - core index']
  #allocation1 [shape = 'u32[144,128]{1,0:T(1,128)}', space=vmem, size = 0x12000, scoped, tag = 'internal scratch']
  %s0 = inlined_call_operand.hbm [shape: f32[8,128], index: 0, kind: input, shape index: {}]
  %s1 = inlined_call_operand.hbm [shape: bf16[128,128], index: 1, kind: input, shape index: {}]
  %s2 = inlined_call_operand.hbm [shape: f32[8,128], index: 2, kind: output, shape index: {}]
  %s3 = sld [smem:[#allocation0]]
  $region34: #{tpu_custom_call.1} parent=0
    _
  %s5 = ssub.s32 1, %s3
  %s6 = scalar_select 0, %s5, %s3
  $region1: #{tpu_custom_call.1} parent=0
    #allocation2 [shape = 'u8[4096]{0}', space=vmem, size = 0x1000, scoped, tag = 'input window, operand 0, single buffered']
    #allocation3 [shape = 's32[1]{0}', space=sflag, size = 0x4, scoped, tag = 'scoped memory for tpu_custom_call.1']
    #allocation4 [shape = 's32[1]{0}', space=sflag, size = 0x4, scoped, tag = 'scoped memory for tpu_custom_call.1']
    #allocation5 [shape = 'u8[32768]{0}', space=vmem, size = 0x8000, scoped, tag = 'input window, operand 1, single buffered']
    #allocation6 [shape = 's32[1]{0}', space=sflag, size = 0x4, scoped, tag = 'scoped memory for tpu_custom_call.1']
    #allocation7 [shape = 'u8[4096]{0}', space=vmem, size = 0x1000, scoped, tag = 'output window, operand 0, single buffered']
    %7 = vsyncpa [#allocation3], 0
    %8 = vsyncpa [#allocation6], 0
    %9 = vsyncpa [#allocation4], 0
    // Predicated region
    $region2: #{tpu_custom_call.1} parent=1 // pred_check
      _
    $region3: #{tpu_custom_call.1} parent=1 // pred_check_branch
      %11 = sbr.rel (0) target = $region5
    $region4: #{tpu_custom_call.1} parent=1 // pred_region
      %s13 = ssub.s32 128, 128
      %14 = vsyncadd [#allocation3], %s13
      %s16 = sshll.u32 [#allocation2], 4
      %s17 = int_to_ptr.vmem [resolvable:$true] %s16
      %19 = dma.hbm_to_vmem [thread:$0]  %s0, 128, %s17, [#allocation3]
    $region5: #{tpu_custom_call.1} parent=1 // pred_fallthru
      _
    // Predicated region
    $region6: #{tpu_custom_call.1} parent=1 // pred_check
      _
    $region7: #{tpu_custom_call.1} parent=1 // pred_check_branch
      %21 = sbr.rel (0) target = $region9
    $region8: #{tpu_custom_call.1} parent=1 // pred_region
      %s23 = ssub.s32 1024, 1024
      %24 = vsyncadd [#allocation6], %s23
      %s25 = sshll.u32 [#allocation5], 4
      %s26 = int_to_ptr.vmem [resolvable:$true] %s25
      %31 = dma.hbm_to_vmem [thread:$0]  %s1, 1024, %s26, [#allocation6], 64, 64, 4
    $region9: #{tpu_custom_call.1} parent=1 // pred_fallthru
      _
    // Predicated region
    $region10: #{tpu_custom_call.1} parent=1 // pred_check
      _
    $region11: #{tpu_custom_call.1} parent=1 // pred_check_branch
      %33 = sbr.rel (0) target = $region13
    $region12: #{tpu_custom_call.1} parent=1 // pred_region
      %34 = dma.done [#allocation3], 128
    $region13: #{tpu_custom_call.1} parent=1 // pred_fallthru
      _
    // Predicated region
    $region14: #{tpu_custom_call.1} parent=1 // pred_check
      _
    $region15: #{tpu_custom_call.1} parent=1 // pred_check_branch
      %36 = sbr.rel (0) target = $region17
    $region16: #{tpu_custom_call.1} parent=1 // pred_region
      %37 = dma.done [#allocation6], 1024
    $region17: #{tpu_custom_call.1} parent=1 // pred_fallthru
      _
    %p39 = scmp.eq.s32.totalorder 0, 0
    // Predicated region
    $region18: #{tpu_custom_call.1} parent=1 // pred_check
      %p40 = pneg %p39
    $region19: #{tpu_custom_call.1} parent=1 // pred_check_branch
      %42 = sbr.rel (%p40) target = $region21
    $region20: #{tpu_custom_call.1} parent=1 // pred_region
      %43 = vst [vmem:[#allocation7] sm:$0xff] 0.0
    $region21: #{tpu_custom_call.1} parent=1 // pred_fallthru
      _
    %s44 = smul.u32 0, 128
    %s45 = sshra.s32 %s44, 7
    %s46 = sand.u32 %s44, 127
    %s47 = scalar_lea.vmem [#allocation2], %s45
    %v48 = vld [vmem:[%s47] sm:$0xff]
    %v49 = vld [vmem:[#allocation7] sm:$0xff]
    %v50 = vpack.c.bf16 %v48, %v48
    %v51 = vld [vmem:[#allocation5] sm:$0xf]
    %v52 = vld [vmem:[#allocation5 + $0x4] sm:$0xf]
    %v53 = vld [vmem:[#allocation5 + $0x8] sm:$0xf]
    %v54 = vld [vmem:[#allocation5 + $0xc] sm:$0xf]
    %v55 = vld [vmem:[#allocation5 + $0x10] sm:$0xf]
    %v56 = vld [vmem:[#allocation5 + $0x14] sm:$0xf]
    %v57 = vld [vmem:[#allocation5 + $0x18] sm:$0xf]
    %v58 = vld [vmem:[#allocation5 + $0x1c] sm:$0xf]
    %v59 = vld [vmem:[#allocation5 + $0x20] sm:$0xf]
    %v60 = vld [vmem:[#allocation5 + $0x24] sm:$0xf]
    %v61 = vld [vmem:[#allocation5 + $0x28] sm:$0xf]
    %v62 = vld [vmem:[#allocation5 + $0x2c] sm:$0xf]
    %v63 = vld [vmem:[#allocation5 + $0x30] sm:$0xf]
    %v64 = vld [vmem:[#allocation5 + $0x34] sm:$0xf]
    %v65 = vld [vmem:[#allocation5 + $0x38] sm:$0xf]
    %v66 = vld [vmem:[#allocation5 + $0x3c] sm:$0xf]
    %v83 = vunpack.c.l.b16 %v51
    %v84 = vunpack.c.l.b16 %v52
    %v85 = vunpack.c.l.b16 %v53
    %v86 = vunpack.c.l.b16 %v54
    %v87 = vunpack.c.l.b16 %v55
    %v88 = vunpack.c.l.b16 %v56
    %v89 = vunpack.c.l.b16 %v57
    %v90 = vunpack.c.l.b16 %v58
    %v91 = vunpack.c.l.b16 %v59
    %v92 = vunpack.c.l.b16 %v60
    %v93 = vunpack.c.l.b16 %v61
    %v94 = vunpack.c.l.b16 %v62
    %v95 = vunpack.c.l.b16 %v63
    %v96 = vunpack.c.l.b16 %v64
    %v97 = vunpack.c.l.b16 %v65
    %v98 = vunpack.c.l.b16 %v66
    %v99 = vpack.c.b16 %v84, %v83
    %v100 = vpack.c.b16 %v86, %v85
    %v101 = vpack.c.b16 %v88, %v87
    %v102 = vpack.c.b16 %v90, %v89
    %v103 = vpack.c.b16 %v92, %v91
    %v104 = vpack.c.b16 %v94, %v93
    %v105 = vpack.c.b16 %v96, %v95
    %v106 = vpack.c.b16 %v98, %v97
    %115 = vmatprep.subr.bf16.mxu0 0
    %116 = vmatpush1.bf16.msra.mxu0 %v99
    %117 = vmatprep.subr.bf16.mxu0 0
    %118 = vmatpush1.bf16.msra.mxu0 %v100
    %119 = vmatprep.subr.bf16.mxu0 0
    %120 = vmatpush1.bf16.msra.mxu0 %v101
    %121 = vmatprep.subr.bf16.mxu0 0
    %122 = vmatpush1.bf16.msra.mxu0 %v102
    %123 = vmatprep.subr.bf16.mxu0 0
    %124 = vmatpush1.bf16.msra.mxu0 %v103
    %125 = vmatprep.subr.bf16.mxu0 0
    %126 = vmatpush1.bf16.msra.mxu0 %v104
    %127 = vmatprep.subr.bf16.mxu0 0
    %128 = vmatpush1.bf16.msra.mxu0 %v105
    %129 = vmatprep.subr.bf16.mxu0 0
    %130 = vmatpush1.bf16.msra.mxu0 %v106
    %131 = vmatprep.subr.bf16.mxu0 0
    %132 = vmatpush1.bf16.msra.mxu0 0
    %133 = vmatprep.subr.bf16.mxu0 0
    %134 = vmatpush1.bf16.msra.mxu0 0
    %135 = vmatprep.subr.bf16.mxu0 0
    %136 = vmatpush1.bf16.msra.mxu0 0
    %137 = vmatprep.subr.bf16.mxu0 0
    %138 = vmatpush1.bf16.msra.mxu0 0
    %139 = vmatprep.subr.bf16.mxu0 0
    %140 = vmatpush1.bf16.msra.mxu0 0
    %141 = vmatprep.subr.bf16.mxu0 0
    %142 = vmatpush1.bf16.msra.mxu0 0
    %143 = vmatprep.subr.bf16.mxu0 0
    %144 = vmatpush1.bf16.msra.mxu0 0
    %145 = vmatprep.subr.bf16.mxu0 0
    %146 = vmatpush1.bf16.msra.mxu0 0
    %147 = vmatprep.mubr.bf16.mxu0 0
    %148 = vmatmul.mubr.bf16.gmra.mrb[0].mxu0 %v50
    %v149 = vpop.f32.mrb[0].mxu0
    %v150 = vadd.f32 0.0, %v149
    %v151 = vpop.f32.mrb[0].mxu0
    %v152 = vpop.f32.mrb[0].mxu0
    %v153 = vpop.f32.mrb[0].mxu0
    %154 = vdwg.mxu0
    %v155 = vadd.f32 %v49, %v150
    %156 = vst [vmem:[#allocation7] sm:$0xff] %v155
    // Predicated region
    $region22: #{tpu_custom_call.1} parent=1 // pred_check
      %p157 = pneg %p39
    $region23: #{tpu_custom_call.1} parent=1 // pred_check_branch
      %159 = sbr.rel (%p157) target = $region25
    $region24: #{tpu_custom_call.1} parent=1 // pred_region
      %v160 = vld [vmem:[#allocation7] sm:$0xff]
      %v161 = vmax.f32 %v160, 0.0
      %162 = vst [vmem:[#allocation7] sm:$0xff] %v161
    $region25: #{tpu_custom_call.1} parent=1 // pred_fallthru
      _
    // Predicated region
    $region26: #{tpu_custom_call.1} parent=1 // pred_check
      _
    $region27: #{tpu_custom_call.1} parent=1 // pred_check_branch
      %164 = sbr.rel (0) target = $region29
    $region28: #{tpu_custom_call.1} parent=1 // pred_region
      %s166 = ssub.s32 128, 128
      %167 = vsyncadd [#allocation4], %s166
      %s169 = sshll.u32 [#allocation7], 4
      %s170 = int_to_ptr.vmem [resolvable:$true] %s169
      %172 = dma.vmem_to_hbm [thread:$0]  %s170, 128, %s2, [#allocation4]
    $region29: #{tpu_custom_call.1} parent=1 // pred_fallthru
      _
    // Predicated region
    $region30: #{tpu_custom_call.1} parent=1 // pred_check
      _
    $region31: #{tpu_custom_call.1} parent=1 // pred_check_branch
      %174 = sbr.rel (0) target = $region33
    $region32: #{tpu_custom_call.1} parent=1 // pred_region
      %175 = dma.done [#allocation4], 128
    $region33: #{tpu_custom_call.1} parent=1 // pred_fallthru
      _
    %176 = vsyncpa [#allocation3], 1
    %177 = vsyncpa [#allocation6], 1
    %178 = vsyncpa [#allocation4], 1

</llo_original>
